<compile_context>
chip_gen: v6e
topology: v6e:2x2x1
jax: 0.10.0
libtpu: 0.0.40
codegen_flags: <defaults>
</compile_context>

<pallas_src>
import jax
import jax.numpy as jnp
from jax.experimental import pallas as pl
from jax.experimental.pallas import tpu as pltpu

EPS_DIST = 1e-6       # eps inside sqrt of _dist
EPS_NORMALIZE = 1e-6  # Normalize layer epsilon
EPS_FNORM = 1e-12     # torch.nn.functional.normalize default eps


# ---------------------------------------------------------------------------
# Tile-size helpers (sized for the tightest generation, v5e)
# ---------------------------------------------------------------------------
def _pick_row_tile(L):
    """Row tile for the distance kernel: multiple of 8 dividing L, ~2 MiB out block."""
    if L % 8 != 0:
        return L
    budget_rows = max(8, (2 * 1024 * 1024) // (4 * L))
    t = min(L, max(8, (budget_rows // 8) * 8))
    while L % t != 0:
        t -= 8
    return t


def _pick_lane_tile(L, K):
    """Lane tile (along L) for the edge kernel: multiple of 128 dividing L."""
    if L % 128 != 0:
        return L
    budget = (3 * 1024 * 1024) // (4 * 19 * max(K, 1))   # (3+9+7) channels, f32
    t = min(L, max(128, (budget // 128) * 128))
    while L % t != 0:
        t -= 128
    return t


# ---------------------------------------------------------------------------
# Kernel 1: masked pairwise distances, row-tiled.  Blocks:
#   x (1, TLr, 3)  xt (1, 3, L)  mc (1, TLr, 1)  mr (1, 1, L)  out (1, TLr, L)
# ---------------------------------------------------------------------------
def _dist_kernel(x_ref, xt_ref, mcol_ref, mrow_ref, d_ref):
    x = x_ref[0]       # (TLr, 3)
    xt = xt_ref[0]     # (3, L)
    mc = mcol_ref[0]   # (TLr, 1)
    mr = mrow_ref[0]   # (1, L)

    # Gram form: |xi - xj|^2 = |xi|^2 + |xj|^2 - 2 xi.xj   (cross term on the MXU)
    row_sq = jnp.sum(x * x, axis=-1, keepdims=True)             # (TLr, 1)
    col_sq = jnp.sum(xt * xt, axis=0, keepdims=True)            # (1, L)
    cross = jnp.dot(x, xt, preferred_element_type=jnp.float32)  # (TLr, L)
    d2 = jnp.maximum(row_sq + col_sq - 2.0 * cross, 0.0)        # clamp cancellation

    mask2d = mc * mr                                            # (TLr, L)
    D = mask2d * jnp.sqrt(d2 + EPS_DIST)
    D_max = jnp.max(D, axis=-1, keepdims=True)                  # per-row max (full row)
    d_ref[0] = D + (1.0 - mask2d) * D_max


# ---------------------------------------------------------------------------
# Kernel 2: local coords dU, R = O^T @ O_neighbor, quaternions, Normalize.
# Feature-major, lane-dense blocks:
#   xc (1,3,1,TL)  oc (1,9,1,TL)  xn (1,3,K,TL)  on (1,9,K,TL)  out (1,7,K,TL)
#   gain/bias: f32[7] in SMEM (read as scalars).
# ---------------------------------------------------------------------------
def _edge_kernel(xc_ref, oc_ref, xn_ref, on_ref, gain_ref, bias_ref, e_ref):
    # center frames / coords: (1, TL) planes; neighbor: (K, TL) planes
    oc = [oc_ref[0, m] for m in range(9)]      # each (1, TL)
    on = [on_ref[0, m] for m in range(9)]      # each (K, TL)
    dX = [xn_ref[0, j] - xc_ref[0, j] for j in range(3)]   # each (K, TL)

    # dU = O @ dX, then L2-normalize (one reciprocal, 3 multiplies)
    dU = []
    for i in range(3):
        dU.append(oc[3 * i + 0] * dX[0]
                  + oc[3 * i + 1] * dX[1]
                  + oc[3 * i + 2] * dX[2])
    du_nrm = jnp.sqrt(dU[0] * dU[0] + dU[1] * dU[1] + dU[2] * dU[2])
    inv_du = 1.0 / jnp.maximum(du_nrm, EPS_FNORM)
    dU = [d * inv_du for d in dU]

    # R = O^T @ O_neighbor ;  R[i, j] = sum_k O[k, i] * On[k, j]
    def R(i, j):
        return (oc[0 + i] * on[0 + j]
                + oc[3 + i] * on[3 + j]
                + oc[6 + i] * on[6 + j])

    Rxx, Ryy, Rzz = R(0, 0), R(1, 1), R(2, 2)
    qx = jnp.sign(R(2, 1) - R(1, 2)) * 0.5 * jnp.sqrt(jnp.abs(1.0 + Rxx - Ryy - Rzz))
    qy = jnp.sign(R(0, 2) - R(2, 0)) * 0.5 * jnp.sqrt(jnp.abs(1.0 - Rxx + Ryy - Rzz))
    qz = jnp.sign(R(1, 0) - R(0, 1)) * 0.5 * jnp.sqrt(jnp.abs(1.0 - Rxx - Ryy + Rzz))
    qw = 0.5 * jnp.sqrt(jnp.maximum(1.0 + Rxx + Ryy + Rzz, 0.0))
    q_nrm = jnp.sqrt(qx * qx + qy * qy + qz * qz + qw * qw)
    inv_q = 1.0 / jnp.maximum(q_nrm, EPS_FNORM)
    qx, qy, qz, qw = qx * inv_q, qy * inv_q, qz * inv_q, qw * inv_q

    feats = (dU[0], dU[1], dU[2], qx, qy, qz, qw)   # 7 x (K, TL)

    # Normalize layer: unbiased variance over the 7 features (ddof=1, torch default)
    s = feats[0]
    for f in feats[1:]:
        s = s + f
    mu = s * (1.0 / 7.0)
    v = (feats[0] - mu) * (feats[0] - mu)
    for f in feats[1:]:
        d = f - mu
        v = v + d * d
    var = v * (1.0 / 6.0)
    inv_sig = 1.0 / (jnp.sqrt(var + EPS_NORMALIZE) + EPS_NORMALIZE)

    for c in range(7):
        e_ref[0, c] = gain_ref[c] * (feats[c] - mu) * inv_sig + bias_ref[c]


# ---------------------------------------------------------------------------
# Wrapper (glue: transposes, top-k, neighbor gathers, reshapes)
# ---------------------------------------------------------------------------
def edge_features(X, O, mask, gain, bias, top_k):
    B, L, _ = X.shape
    K = top_k
    X = X.astype(jnp.float32)
    O9 = O.reshape(B, L, 9).astype(jnp.float32)
    mask = mask.astype(jnp.float32)

    Xt = jnp.transpose(X, (0, 2, 1))          # (B, 3, L) feature-major coords

    # ---- distance kernel (row-tiled) ----
    TLr = _pick_row_tile(L)
    d_adjust = pl.pallas_call(
        _dist_kernel,
        out_shape=jax.ShapeDtypeStruct((B, L, L), jnp.float32),
        grid=(B, L // TLr),
        in_specs=[
            pl.BlockSpec((1, TLr, 3), lambda b, r: (b, r, 0)),
            pl.BlockSpec((1, 3, L), lambda b, r: (b, 0, 0)),
            pl.BlockSpec((1, TLr, 1), lambda b, r: (b, r, 0)),
            pl.BlockSpec((1, 1, L), lambda b, r: (b, 0, 0)),
        ],
        out_specs=pl.BlockSpec((1, TLr, L), lambda b, r: (b, r, 0)),
        compiler_params=pltpu.CompilerParams(
            dimension_semantics=("parallel", "parallel")),
    )(X, Xt, mask[:, :, None], mask[:, None, :])

    # TODO(synk): torch.topk(largest=False) tie-breaking may differ from
    # jax.lax.top_k on exactly-equal distances (e.g. fully masked rows).
    neg_d, E_idx = jax.lax.top_k(-d_adjust, K)
    D_neighbors = -neg_d  # noqa: F841  (not returned by torch forward; kept for parity)

    # ---- neighbor gathers, directly in feature-major (B, C, K, L) layout ----
    # TODO(synk): gather could be fused into the edge kernel via scalar-prefetched
    # E_idx + pl.Element row maps; kept as XLA glue here.
    Of = jnp.transpose(O9, (0, 2, 1))                      # (B, 9, L)
    idxT = jnp.transpose(E_idx, (0, 2, 1))                 # (B, K, L)
    Xn = jax.vmap(lambda f, idx: f[:, idx])(Xt, idxT)      # (B, 3, K, L)
    On = jax.vmap(lambda f, idx: f[:, idx])(Of, idxT)      # (B, 9, K, L)
    xc = Xt[:, :, None, :]                                 # (B, 3, 1, L)  (no K broadcast)
    oc = Of[:, :, None, :]                                 # (B, 9, 1, L)

    g1 = gain.reshape(7).astype(jnp.float32)
    b1 = bias.reshape(7).astype(jnp.float32)

    # ---- edge kernel (lane-tiled along L) ----
    TL = _pick_lane_tile(L, K)
    E_cm = pl.pallas_call(
        _edge_kernel,
        out_shape=jax.ShapeDtypeStruct((B, 7, K, L), jnp.float32),
        grid=(B, L // TL),
        in_specs=[
            pl.BlockSpec((1, 3, 1, TL), lambda b, j: (b, 0, 0, j)),
            pl.BlockSpec((1, 9, 1, TL), lambda b, j: (b, 0, 0, j)),
            pl.BlockSpec((1, 3, K, TL), lambda b, j: (b, 0, 0, j)),
            pl.BlockSpec((1, 9, K, TL), lambda b, j: (b, 0, 0, j)),
            pl.BlockSpec(memory_space=pltpu.MemorySpace.SMEM),
            pl.BlockSpec(memory_space=pltpu.MemorySpace.SMEM),
        ],
        out_specs=pl.BlockSpec((1, 7, K, TL), lambda b, j: (b, 0, 0, j)),
        compiler_params=pltpu.CompilerParams(
            dimension_semantics=("parallel", "parallel")),
    )(xc, oc, Xn, On, g1, b1)

    E = jnp.transpose(E_cm, (0, 3, 2, 1))   # (B, L, K, 7) — matches torch convention
    return E, E_idx


# ---------------------------------------------------------------------------
# Pure-JAX reference (uses kernel-produced E_idx so tie-breaking can't diverge)
# ---------------------------------------------------------------------------
def _reference_E(X, O, E_idx, gain, bias):
    Xn = jax.vmap(lambda x, idx: x[idx])(X, E_idx)            # (B,L,K,3)
    On = jax.vmap(lambda o, idx: o[idx])(O, E_idx)            # (B,L,K,3,3)
    dX = Xn - X[:, :, None, :]
    dU = jnp.einsum('blij,blkj->blki', O, dX)
    dU = dU / jnp.maximum(jnp.linalg.norm(dU, axis=-1, keepdims=True), EPS_FNORM)
    R = jnp.einsum('blji,blkjm->blkim', O, On)                # O^T @ On
    Rxx, Ryy, Rzz = R[..., 0, 0], R[..., 1, 1], R[..., 2, 2]
    mag = 0.5 * jnp.sqrt(jnp.abs(1.0 + jnp.stack(
        [Rxx - Ryy - Rzz, -Rxx + Ryy - Rzz, -Rxx - Ryy + Rzz], -1)))
    signs = jnp.sign(jnp.stack(
        [R[..., 2, 1] - R[..., 1, 2],
         R[..., 0, 2] - R[..., 2, 0],
         R[..., 1, 0] - R[..., 0, 1]], -1))
    xyz = signs * mag
    w = jnp.sqrt(jnp.maximum(1.0 + Rxx + Ryy + Rzz, 0.0))[..., None] / 2.0
    Q = jnp.concatenate([xyz, w], -1)
    Q = Q / jnp.maximum(jnp.linalg.norm(Q, axis=-1, keepdims=True), EPS_FNORM)
    feat = jnp.concatenate([dU, Q], -1)
    mu = feat.mean(-1, keepdims=True)
    var = jnp.sum((feat - mu) ** 2, -1, keepdims=True) / 6.0
    sigma = jnp.sqrt(var + EPS_NORMALIZE)
    return gain * (feat - mu) / (sigma + EPS_NORMALIZE) + bias


if __name__ == "__main__":
    B, L, TOP_K, EDGE_DIM = 2, 16, 8, 7

    key = jax.random.PRNGKey(0)
    kx, ko = jax.random.split(key)
    X = jax.random.normal(kx, (B, L, 3), dtype=jnp.float32)
    O = jax.random.normal(ko, (B, L, 3, 3), dtype=jnp.float32)
    mask = jnp.ones((B, L), dtype=jnp.float32)
    mask = mask.at[1, L - 3:].set(0.0)          # exercise masking

    # Normalize parameters, exactly as the module's __init__ (ones / zeros).
    gain = jnp.ones((EDGE_DIM,), dtype=jnp.float32)
    bias = jnp.zeros((EDGE_DIM,), dtype=jnp.float32)

    E, E_idx = edge_features(X, O, mask, gain, bias, TOP_K)
    E = jax.block_until_ready(E)
    E_idx = jax.block_until_ready(E_idx)

    assert E.shape == (B, L, TOP_K, EDGE_DIM)
    assert E_idx.shape == (B, L, TOP_K)

    # correctness check against a pure-JAX reference
    E_ref = _reference_E(X, O, E_idx, gain, bias)
    err = float(jnp.max(jnp.abs(E - E_ref)))
    assert err < 2e-4, f"max abs error too large: {err}"

    print("KERNEL_OK")
</pallas_src>

<mosaic_0001>
module attributes {stable_mosaic.version = 11 : i64} {
  func.func @_dist_kernel(%arg0: i32, %arg1: i32, %arg2: memref<1x16x3xf32, #tpu.memory_space<vmem>>, %arg3: memref<1x3x16xf32, #tpu.memory_space<vmem>>, %arg4: memref<1x16x1xf32, #tpu.memory_space<vmem>>, %arg5: memref<1x1x16xf32, #tpu.memory_space<vmem>>, %arg6: memref<1x16x16xf32, #tpu.memory_space<vmem>>) attributes {dimension_semantics = [#tpu.dimension_semantics<parallel>, #tpu.dimension_semantics<parallel>], iteration_bounds = array<i64: 2, 1>, scalar_prefetch = 0 : i64, scratch_operands = 0 : i64, tpu.core_type = #tpu.core_type<tc>, window_params = [{transform_indices = @transform_0, window_bounds = array<i64: 1, 16, 3>}, {transform_indices = @transform_1, window_bounds = array<i64: 1, 3, 16>}, {transform_indices = @transform_2, window_bounds = array<i64: 1, 16, 1>}, {transform_indices = @transform_3, window_bounds = array<i64: 1, 1, 16>}, {transform_indices = @transform_4, window_bounds = array<i64: 1, 16, 16>}]} {
    %c0 = arith.constant 0 : index
    %c0_0 = arith.constant 0 : index
    %c0_1 = arith.constant 0 : index
    %0 = vector.load %arg2[%c0, %c0_0, %c0_1] : memref<1x16x3xf32, #tpu.memory_space<vmem>>, vector<1x16x3xf32>
    %1 = vector.shape_cast %0 : vector<1x16x3xf32> to vector<16x3xf32>
    %c0_2 = arith.constant 0 : index
    %c0_3 = arith.constant 0 : index
    %c0_4 = arith.constant 0 : index
    %2 = vector.load %arg3[%c0_2, %c0_3, %c0_4] : memref<1x3x16xf32, #tpu.memory_space<vmem>>, vector<1x3x16xf32>
    %3 = vector.shape_cast %2 : vector<1x3x16xf32> to vector<3x16xf32>
    %c0_5 = arith.constant 0 : index
    %c0_6 = arith.constant 0 : index
    %c0_7 = arith.constant 0 : index
    %4 = vector.load %arg4[%c0_5, %c0_6, %c0_7] : memref<1x16x1xf32, #tpu.memory_space<vmem>>, vector<1x16x1xf32>
    %5 = vector.shape_cast %4 : vector<1x16x1xf32> to vector<16x1xf32>
    %c0_8 = arith.constant 0 : index
    %c0_9 = arith.constant 0 : index
    %c0_10 = arith.constant 0 : index
    %6 = vector.load %arg5[%c0_8, %c0_9, %c0_10] : memref<1x1x16xf32, #tpu.memory_space<vmem>>, vector<1x1x16xf32>
    %7 = vector.shape_cast %6 : vector<1x1x16xf32> to vector<1x16xf32>
    %8 = arith.mulf %1, %1 : vector<16x3xf32>
    %cst = arith.constant dense<0.000000e+00> : vector<16xf32>
    %9 = vector.multi_reduction <add>, %8, %cst [1] : vector<16x3xf32> to vector<16xf32>
    %10 = vector.shape_cast %9 : vector<16xf32> to vector<16x1xf32>
    %11 = arith.mulf %3, %3 : vector<3x16xf32>
    %cst_11 = arith.constant dense<0.000000e+00> : vector<16xf32>
    %12 = vector.multi_reduction <add>, %11, %cst_11 [0] : vector<3x16xf32> to vector<16xf32>
    %13 = vector.shape_cast %12 : vector<16xf32> to vector<1x16xf32>
    %cst_12 = arith.constant dense<0.000000e+00> : vector<16x16xf32>
    %14 = tpu.matmul %1, %3, %cst_12 {dimension_numbers = #tpu.dot_dimension_numbers<[1], [0], [0], [1], [0, 0, 1, 1], [], []>} : vector<16x3xf32>, vector<3x16xf32>, vector<16x16xf32> -> vector<16x16xf32>
    %15 = vector.broadcast %10 : vector<16x1xf32> to vector<16x16xf32>
    %16 = vector.broadcast %13 : vector<1x16xf32> to vector<16x16xf32>
    %17 = arith.addf %15, %16 : vector<16x16xf32>
    %cst_13 = arith.constant 2.000000e+00 : f32
    %18 = vector.broadcast %cst_13 : f32 to vector<16x16xf32>
    %19 = arith.mulf %18, %14 : vector<16x16xf32>
    %20 = arith.subf %17, %19 : vector<16x16xf32>
    %cst_14 = arith.constant 0.000000e+00 : f32
    %21 = vector.broadcast %cst_14 : f32 to vector<16x16xf32>
    %22 = arith.maximumf %20, %21 : vector<16x16xf32>
    %23 = vector.broadcast %5 : vector<16x1xf32> to vector<16x16xf32>
    %24 = vector.broadcast %7 : vector<1x16xf32> to vector<16x16xf32>
    %25 = arith.mulf %23, %24 : vector<16x16xf32>
    %cst_15 = arith.constant 9.99999997E-7 : f32
    %26 = vector.broadcast %cst_15 : f32 to vector<16x16xf32>
    %27 = arith.addf %22, %26 : vector<16x16xf32>
    %28 = math.sqrt %27 : vector<16x16xf32>
    %29 = arith.mulf %25, %28 : vector<16x16xf32>
    %cst_16 = arith.constant dense<0xFF800000> : vector<16xf32>
    %30 = vector.multi_reduction <maximumf>, %29, %cst_16 [1] : vector<16x16xf32> to vector<16xf32>
    %31 = vector.shape_cast %30 : vector<16xf32> to vector<16x1xf32>
    %cst_17 = arith.constant 1.000000e+00 : f32
    %32 = vector.broadcast %cst_17 : f32 to vector<16x16xf32>
    %33 = arith.subf %32, %25 : vector<16x16xf32>
    %34 = vector.broadcast %31 : vector<16x1xf32> to vector<16x16xf32>
    %35 = arith.mulf %33, %34 : vector<16x16xf32>
    %36 = arith.addf %29, %35 : vector<16x16xf32>
    %c0_18 = arith.constant 0 : index
    %c0_19 = arith.constant 0 : index
    %c0_20 = arith.constant 0 : index
    %37 = vector.load %arg6[%c0_18, %c0_19, %c0_20] : memref<1x16x16xf32, #tpu.memory_space<vmem>>, vector<1x16x16xf32>
    %38 = vector.shape_cast %37 : vector<1x16x16xf32> to vector<16x16xf32>
    %39 = vector.shape_cast %36 : vector<16x16xf32> to vector<1x16x16xf32>
    tpu.vector_store %arg6[%c0_18, %c0_19, %c0_20], %39 {strides = array<i32>} : memref<1x16x16xf32, #tpu.memory_space<vmem>>, vector<1x16x16xf32>,
    return
  }
  func.func @transform_0(%arg0: i32, %arg1: i32) -> (i32, i32, i32) {
    %c0_i32 = arith.constant 0 : i32
    %c0_i32_0 = arith.constant 0 : i32
    return %arg0, %arg1, %c0_i32 : i32, i32, i32
  }
  func.func @transform_1(%arg0: i32, %arg1: i32) -> (i32, i32, i32) {
    %c0_i32 = arith.constant 0 : i32
    %c0_i32_0 = arith.constant 0 : i32
    %c0_i32_1 = arith.constant 0 : i32
    return %arg0, %c0_i32, %c0_i32_0 : i32, i32, i32
  }
  func.func @transform_2(%arg0: i32, %arg1: i32) -> (i32, i32, i32) {
    %c0_i32 = arith.constant 0 : i32
    %c0_i32_0 = arith.constant 0 : i32
    return %arg0, %arg1, %c0_i32 : i32, i32, i32
  }
  func.func @transform_3(%arg0: i32, %arg1: i32) -> (i32, i32, i32) {
    %c0_i32 = arith.constant 0 : i32
    %c0_i32_0 = arith.constant 0 : i32
    %c0_i32_1 = arith.constant 0 : i32
    return %arg0, %c0_i32, %c0_i32_0 : i32, i32, i32
  }
  func.func @transform_4(%arg0: i32, %arg1: i32) -> (i32, i32, i32) {
    %c0_i32 = arith.constant 0 : i32
    %c0_i32_0 = arith.constant 0 : i32
    return %arg0, %arg1, %c0_i32 : i32, i32, i32
  }
}

</mosaic_0001>

<llo_original>
// kernel: tpu_custom_call.1
$region0: #{tpu_custom_call.1}
  #allocation0 [shape = 'u32[]', space=smem, size = 0x4, offset = 0x4, fixed_abs, tag = 'smem constant byte address 0x4 - core index']
  #allocation1 [shape = 'u32[144,128]{1,0:T(1,128)}', space=vmem, size = 0x12000, scoped, tag = 'internal scratch']
  %s0 = inlined_call_operand.vmem [shape: f32[2,16,3], index: 0, kind: input, shape index: {}]
  %s1 = inlined_call_operand.vmem [shape: f32[2,3,16], index: 1, kind: input, shape index: {}]
  %s2 = inlined_call_operand.vmem [shape: f32[2,16,1], index: 2, kind: input, shape index: {}]
  %s3 = inlined_call_operand.vmem [shape: f32[2,1,16], index: 3, kind: input, shape index: {}]
  %s4 = inlined_call_operand.hbm [shape: f32[2,16,16], index: 4, kind: output, shape index: {}]
  %s5 = sld [smem:[#allocation0]]
  $region49: #{tpu_custom_call.1} parent=0
    _
  %s7 = ssub.s32 1, %s5
  %s8 = scalar_select 0, %s7, %s5
  $region1: #{tpu_custom_call.1} parent=0
    #allocation2 [shape = 'u8[16384]{0}', space=vmem, size = 0x4000, scoped, tag = 'output window, operand 0']
    #allocation3 [shape = 's32[2]{0}', space=sflag, size = 0x8, scoped, tag = 'scoped memory for tpu_custom_call.1']
    %9 = vsyncpa [#allocation3], 0
    %s10 = scalar_lea.sflag [#allocation3], 1
    %11 = vsyncpa %s10, 0
    loop: start=0, step=1, limit=4
    $region2: #{tpu_custom_call.1} parent=1 // loop_pre_header
      _
    $region3: #{tpu_custom_call.1} parent=1 // loop_header
      %s13 = sphi 0, %s17
      %p14 = scmp.ge.s32.totalorder %s13, 4
      %s20 = sphi 0, %s32
      %s21 = sphi 0, %s28
      %s22 = sphi 0, %s20
      %s23 = sphi 0, %s21
      %s24 = sphi 0, %s22
      %s25 = sphi 0, %s23
      %s37 = sphi 0, %s39
      %s40 = sphi 0, %s37
      %s41 = sphi 0, %s40
      %s57 = sphi 0, %s41
      %s63 = sphi 0, %s65
      %s66 = sphi 0, %s63
      %s67 = sphi 0, %s66
      %s83 = sphi 0, %s67
      %s91 = sphi 0, %s93
      %s94 = sphi 0, %s91
      %s95 = sphi 0, %s94
      %s111 = sphi 0, %s95
      %s117 = sphi 0, %s119
      %s120 = sphi 0, %s117
      %s121 = sphi 0, %s120
      %s137 = sphi 0, %s121
      %s145 = sphi 0, %s147
      %s148 = sphi 0, %s145
      %s149 = sphi 0, %s148
      %s165 = sphi 0, %s149
    $region4: #{tpu_custom_call.1} parent=1 // loop_header_branch
      %16 = sbr.rel (%p14) target = $region8
    $region5: #{tpu_custom_call.1} parent=1 // loop_body
      %s18 = ssub.s32 %s13, 1
      %s19 = ssub.s32 %s13, 2
      %s26 = sadd.s32 1, %s21
      %p27 = scmp.ge.s32.totalorder %s26, 1
      %s28 = scalar_select %p27, 0, %s26
      %s29 = sadd.s32 1, %s20
      %s30 = scalar_select %p27, %s29, %s20
      %p31 = scmp.ge.s32.totalorder %s30, 2
      %s32 = scalar_select %p31, 0, %s30
      %s33 = ssub.s32 %s20, %s32
      %s34 = ssub.s32 %s21, %s28
      %s35 = sor.u32 %s33, %s34
      %p36 = scmp.eq.s32.totalorder %s35, 0
      %s38 = sadd.s32 %s37, 1
      %s39 = scalar_select %p36, %s37, %s38
      %p42 = pneg %p36
      %p43 = scmp.eq.s32.totalorder %s13, 1
      %p44 = por %p42, %p43
      %p45 = scmp.ne.s32.totalorder %s37, %s40
      %p46 = scmp.eq.s32.totalorder %s13, 0
      %p47 = por %p45, %p46
      %p48 = scmp.ne.s32.totalorder %s37, %s40
      %p49 = scmp.eq.s32.totalorder %s18, 1
      %p50 = por %p48, %p49
      %p51 = scmp.ne.s32.totalorder %s40, %s41
      %p52 = scmp.eq.s32.totalorder %s18, 0
      %p53 = por %p51, %p52
      %p54 = scmp.ne.s32.totalorder %s40, %s41
      %p55 = scmp.eq.s32.totalorder %s19, 1
      %p56 = por %p54, %p55
      %p58 = scmp.ne.s32.totalorder %s41, %s57
      %p59 = scmp.eq.s32.totalorder %s19, 0
      %p60 = por %p58, %p59
      %s61 = ssub.s32 %s20, %s32
      %p62 = scmp.eq.s32.totalorder %s61, 0
      %s64 = sadd.s32 %s63, 1
      %s65 = scalar_select %p62, %s63, %s64
      %p68 = pneg %p62
      %p69 = scmp.eq.s32.totalorder %s13, 1
      %p70 = por %p68, %p69
      %p71 = scmp.ne.s32.totalorder %s63, %s66
      %p72 = scmp.eq.s32.totalorder %s13, 0
      %p73 = por %p71, %p72
      %p74 = scmp.ne.s32.totalorder %s63, %s66
      %p75 = scmp.eq.s32.totalorder %s18, 1
      %p76 = por %p74, %p75
      %p77 = scmp.ne.s32.totalorder %s66, %s67
      %p78 = scmp.eq.s32.totalorder %s18, 0
      %p79 = por %p77, %p78
      %p80 = scmp.ne.s32.totalorder %s66, %s67
      %p81 = scmp.eq.s32.totalorder %s19, 1
      %p82 = por %p80, %p81
      %p84 = scmp.ne.s32.totalorder %s67, %s83
      %p85 = scmp.eq.s32.totalorder %s19, 0
      %p86 = por %p84, %p85
      %s87 = ssub.s32 %s20, %s32
      %s88 = ssub.s32 %s21, %s28
      %s89 = sor.u32 %s87, %s88
      %p90 = scmp.eq.s32.totalorder %s89, 0
      %s92 = sadd.s32 %s91, 1
      %s93 = scalar_select %p90, %s91, %s92
      %p96 = pneg %p90
      %p97 = scmp.eq.s32.totalorder %s13, 1
      %p98 = por %p96, %p97
      %p99 = scmp.ne.s32.totalorder %s91, %s94
      %p100 = scmp.eq.s32.totalorder %s13, 0
      %p101 = por %p99, %p100
      %p102 = scmp.ne.s32.totalorder %s91, %s94
      %p103 = scmp.eq.s32.totalorder %s18, 1
      %p104 = por %p102, %p103
      %p105 = scmp.ne.s32.totalorder %s94, %s95
      %p106 = scmp.eq.s32.totalorder %s18, 0
      %p107 = por %p105, %p106
      %p108 = scmp.ne.s32.totalorder %s94, %s95
      %p109 = scmp.eq.s32.totalorder %s19, 1
      %p110 = por %p108, %p109
      %p112 = scmp.ne.s32.totalorder %s95, %s111
      %p113 = scmp.eq.s32.totalorder %s19, 0
      %p114 = por %p112, %p113
      %s115 = ssub.s32 %s20, %s32
      %p116 = scmp.eq.s32.totalorder %s115, 0
      %s118 = sadd.s32 %s117, 1
      %s119 = scalar_select %p116, %s117, %s118
      %p122 = pneg %p116
      %p123 = scmp.eq.s32.totalorder %s13, 1
      %p124 = por %p122, %p123
      %p125 = scmp.ne.s32.totalorder %s117, %s120
      %p126 = scmp.eq.s32.totalorder %s13, 0
      %p127 = por %p125, %p126
      %p128 = scmp.ne.s32.totalorder %s117, %s120
      %p129 = scmp.eq.s32.totalorder %s18, 1
      %p130 = por %p128, %p129
      %p131 = scmp.ne.s32.totalorder %s120, %s121
      %p132 = scmp.eq.s32.totalorder %s18, 0
      %p133 = por %p131, %p132
      %p134 = scmp.ne.s32.totalorder %s120, %s121
      %p135 = scmp.eq.s32.totalorder %s19, 1
      %p136 = por %p134, %p135
      %p138 = scmp.ne.s32.totalorder %s121, %s137
      %p139 = scmp.eq.s32.totalorder %s19, 0
      %p140 = por %p138, %p139
      %s141 = ssub.s32 %s20, %s32
      %s142 = ssub.s32 %s21, %s28
      %s143 = sor.u32 %s141, %s142
      %p144 = scmp.eq.s32.totalorder %s143, 0
      %s146 = sadd.s32 %s145, 1
      %s147 = scalar_select %p144, %s145, %s146
      %p150 = pneg %p144
      %p151 = scmp.eq.s32.totalorder %s13, 1
      %p152 = por %p150, %p151
      %p153 = scmp.ne.s32.totalorder %s145, %s148
      %p154 = scmp.eq.s32.totalorder %s13, 0
      %p155 = por %p153, %p154
      %p156 = scmp.ne.s32.totalorder %s145, %s148
      %p157 = scmp.eq.s32.totalorder %s18, 1
      %p158 = por %p156, %p157
      %p159 = scmp.ne.s32.totalorder %s148, %s149
      %p160 = scmp.eq.s32.totalorder %s18, 0
      %p161 = por %p159, %p160
      %p162 = scmp.ne.s32.totalorder %s148, %s149
      %p163 = scmp.eq.s32.totalorder %s19, 1
      %p164 = por %p162, %p163
      %p166 = scmp.ne.s32.totalorder %s149, %s165
      %p167 = scmp.eq.s32.totalorder %s19, 0
      %p168 = por %p166, %p167
      %p169 = scmp.le.s32.totalorder 1, %s13
      %p170 = scmp.lt.s32.totalorder %s13, 3
      %p171 = pnand %p169, %p170
      %p172 = pneg %p171
      // Predicated region
      $region9: #{tpu_custom_call.1} parent=5 // pred_check
        _
      $region10: #{tpu_custom_call.1} parent=5 // pred_check_branch
        %174 = sbr.rel (%p171) target = $region12
      $region11: #{tpu_custom_call.1} parent=5 // pred_region
        %s175 = ssub.s32 %s13, 1
      $region12: #{tpu_custom_call.1} parent=5 // pred_fallthru
        _
      %p176 = scmp.lt.s32.totalorder %s13, 2
      // Predicated region
      $region13: #{tpu_custom_call.1} parent=5 // pred_check
        %p177 = pneg %p176
      $region14: #{tpu_custom_call.1} parent=5 // pred_check_branch
        %179 = sbr.rel (%p177) target = $region16
      $region15: #{tpu_custom_call.1} parent=5 // pred_region
        // Predicated region
        $region17: #{tpu_custom_call.1} parent=15 // pred_check
          %p180 = pneg %p47
        $region18: #{tpu_custom_call.1} parent=15 // pred_check_branch
          %182 = sbr.rel (%p180) target = $region20
        $region19: #{tpu_custom_call.1} parent=15 // pred_region
          %s183 = smul.u32 2, %s21
          %p184 = scmp.lt.s32.totalorder %s20, 1
          %s185 = scalar_select %p184, %s20, 1
          %p186 = scmp.lt.s32.totalorder %s183, 1
          %s187 = scalar_select %p186, %s183, 1
          %s188 = smul.addr %s185, 2
          %s189 = sadd.s32 %s187, %s188
          %s190 = smul.addr %s189, 8
          %s191 = scalar_lea.vmem %s0, %s190
          %s192 = smul.u32 2, %s21
        $region20: #{tpu_custom_call.1} parent=15 // pred_fallthru
          _
        // Predicated region
        $region21: #{tpu_custom_call.1} parent=15 // pred_check
          %p193 = pneg %p73
        $region22: #{tpu_custom_call.1} parent=15 // pred_check_branch
          %195 = sbr.rel (%p193) target = $region24
        $region23: #{tpu_custom_call.1} parent=15 // pred_region
          %p196 = scmp.lt.s32.totalorder %s20, 1
          %s197 = scalar_select %p196, %s20, 1
          %s198 = smul.addr %s197, 4
          %s199 = scalar_lea.vmem %s1, %s198
        $region24: #{tpu_custom_call.1} parent=15 // pred_fallthru
          _
        // Predicated region
        $region25: #{tpu_custom_call.1} parent=15 // pred_check
          %p200 = pneg %p101
        $region26: #{tpu_custom_call.1} parent=15 // pred_check_branch
          %202 = sbr.rel (%p200) target = $region28
        $region27: #{tpu_custom_call.1} parent=15 // pred_region
          %s203 = smul.u32 2, %s21
          %p204 = scmp.lt.s32.totalorder %s20, 1
          %s205 = scalar_select %p204, %s20, 1
          %p206 = scmp.lt.s32.totalorder %s203, 1
          %s207 = scalar_select %p206, %s203, 1
          %s208 = smul.addr %s205, 2
          %s209 = sadd.s32 %s207, %s208
          %s210 = smul.addr %s209, 8
          %s211 = scalar_lea.vmem %s2, %s210
          %s212 = smul.u32 2, %s21
        $region28: #{tpu_custom_call.1} parent=15 // pred_fallthru
          _
        // Predicated region
        $region29: #{tpu_custom_call.1} parent=15 // pred_check
          %p213 = pneg %p127
        $region30: #{tpu_custom_call.1} parent=15 // pred_check_branch
          %215 = sbr.rel (%p213) target = $region32
        $region31: #{tpu_custom_call.1} parent=15 // pred_region
          %p216 = scmp.lt.s32.totalorder %s20, 1
          %s217 = scalar_select %p216, %s20, 1
          %s218 = scalar_lea.vmem %s3, %s217
        $region32: #{tpu_custom_call.1} parent=15 // pred_fallthru
          _
      $region16: #{tpu_custom_call.1} parent=5 // pred_fallthru
        _
      %p219 = scmp.le.s32.totalorder 1, %s13
      %p220 = scmp.lt.s32.totalorder %s13, 3
      %p221 = pnand %p219, %p220
      %p222 = pneg %p221
      // Predicated region
      $region33: #{tpu_custom_call.1} parent=5 // pred_check
        _
      $region34: #{tpu_custom_call.1} parent=5 // pred_check_branch
        %224 = sbr.rel (%p221) target = $region36
      $region35: #{tpu_custom_call.1} parent=5 // pred_region
        %s225 = ssub.s32 %s13, 1
        %s226 = smul.u32 2, %s23
        %p227 = scmp.lt.s32.totalorder %s22, 1
        %s228 = scalar_select %p227, %s22, 1
        %p229 = scmp.lt.s32.totalorder %s226, 1
        %s230 = scalar_select %p229, %s226, 1
        %s231 = smul.addr %s228, 2
        %s232 = sadd.s32 %s230, %s231
        %s233 = smul.addr %s232, 8
        %s234 = scalar_lea.vmem %s0, %s233
        %p235 = pneg %p53
        %p236 = pneg %p50
        %p237 = scmp.lt.s32.totalorder %s22, 1
        %s238 = scalar_select %p237, %s22, 1
        %s239 = smul.addr %s238, 4
        %s240 = scalar_lea.vmem %s1, %s239
        %p241 = pneg %p79
        %p242 = pneg %p76
        %s243 = smul.u32 2, %s23
        %p244 = scmp.lt.s32.totalorder %s22, 1
        %s245 = scalar_select %p244, %s22, 1
        %p246 = scmp.lt.s32.totalorder %s243, 1
        %s247 = scalar_select %p246, %s243, 1
        %s248 = smul.addr %s245, 2
        %s249 = sadd.s32 %s247, %s248
        %s250 = smul.addr %s249, 8
        %s251 = scalar_lea.vmem %s2, %s250
        %p252 = pneg %p107
        %p253 = pneg %p104
        %p254 = scmp.lt.s32.totalorder %s22, 1
        %s255 = scalar_select %p254, %s22, 1
        %s256 = scalar_lea.vmem %s3, %s255
        %p257 = pneg %p133
        %p258 = pneg %p130
        %p259 = pneg %p161
        %p260 = pneg %p158
        %s261 = sand.u32 %s148, 1
        %s262 = scalar_lea.sflag [#allocation3], %s261
        %s263 = sand.u32 %s148, 1
        %s264 = smul.addr %s263, 16
        %s265 = scalar_lea.vmem [#allocation2], %s264
        %s266 = smul.u32 2, %s23
        %p267 = scmp.lt.s32.totalorder %s22, 1
        %s268 = scalar_select %p267, %s22, 1
        %p269 = scmp.lt.s32.totalorder %s266, 1
        %s270 = scalar_select %p269, %s266, 1
        %s271 = smul.addr %s268, 2
        %s272 = sadd.s32 %s270, %s271
        %s273 = smul.addr %s272, 8
        %s274 = scalar_lea.vmem %s0, %s273
        %s275 = smul.u32 2, %s23
        %p276 = scmp.lt.s32.totalorder %s22, 1
        %s277 = scalar_select %p276, %s22, 1
        %s278 = smul.addr %s277, 4
        %s279 = scalar_lea.vmem %s1, %s278
        %s280 = smul.u32 2, %s23
        %p281 = scmp.lt.s32.totalorder %s22, 1
        %s282 = scalar_select %p281, %s22, 1
        %p283 = scmp.lt.s32.totalorder %s280, 1
        %s284 = scalar_select %p283, %s280, 1
        %s285 = smul.addr %s282, 2
        %s286 = sadd.s32 %s284, %s285
        %s287 = smul.addr %s286, 8
        %s288 = scalar_lea.vmem %s2, %s287
        %s289 = smul.u32 2, %s23
        %p290 = scmp.lt.s32.totalorder %s22, 1
        %s291 = scalar_select %p290, %s22, 1
        %s292 = scalar_lea.vmem %s3, %s291
        %s293 = smul.u32 2, %s23
        %v294 = vld [vmem:[%s274] sm:$0xff]
        %v295 = vld [vmem:[%s274 + $0x8] sm:$0xff]
        %v296 = vld [vmem:[%s279] sm:$0x7]
        %v297 = vld [vmem:[%s288] sm:$0xff]
        %v298 = vld [vmem:[%s288 + $0x8] sm:$0xff]
        %v299 = vld [vmem:[%s292] sm:$0x1]
        %v300 = vmul.f32 %v294, %v294
        %v301 = vmul.f32 %v295, %v295
        %vm302 = vcmask 23552
        %v303 = vsel %vm302, %v300, 0.0
        %304 = vadd.xlane.f32.xlu0 %v303
        %v305 = vpop.xlane.xlu0 %304
        %v306 = vsel %vm302, %v301, 0.0
        %307 = vadd.xlane.f32.xlu0 %v306
        %v308 = vpop.xlane.xlu0 %307
        %v309 = vmul.f32 %v296, %v296
        %vm310 = vcmask 124928
        %v311 = vsel %vm310, %v309, 0.0
        %v312 = vrot.slane %v311, 4
        %v313 = vadd.f32 %v311, %v312
        %v314 = vrot.slane %v313, 2
        %v315 = vadd.f32 %v313, %v314
        %v316 = vrot.slane %v315, 1
        %v317 = vadd.f32 %v315, %v316
        %v319 = vsel %vm302, %v294, 0
        %v322 = vsel %vm302, %v295, 0
        %vm324 = vcmask 1042432
        %v326 = vsel %vm324, %v296, 0
        %328 = vmatprep.subr.mxu0 0.0
        %329 = vmatpush1.msra.mxu0 0.0
        %330 = vmatprep.subr.mxu0 0.0
        %331 = vmatpush1.msra.mxu0 0.0
        %332 = vmatprep.subr.mxu0 0.0
        %333 = vmatpush1.msra.mxu0 0.0
        %334 = vmatprep.subr.mxu0 0.0
        %335 = vmatpush1.msra.mxu0 0.0
        %336 = vmatprep.subr.mxu0 0.0
        %337 = vmatpush1.msra.mxu0 0.0
        %338 = vmatprep.subr.mxu0 0.0
        %339 = vmatpush1.msra.mxu0 0.0
        %340 = vmatprep.subr.mxu0 0.0
        %341 = vmatpush1.msra.mxu0 0.0
        %342 = vmatprep.subr.mxu0 0.0
        %343 = vmatpush1.msra.mxu0 0.0
        %344 = vmatprep.subr.mxu0 0.0
        %345 = vmatpush1.msra.mxu0 0.0
        %346 = vmatprep.subr.mxu0 0.0
        %347 = vmatpush1.msra.mxu0 0.0
        %348 = vmatprep.subr.mxu0 0.0
        %349 = vmatpush1.msra.mxu0 0.0
        %350 = vmatprep.subr.mxu0 0.0
        %351 = vmatpush1.msra.mxu0 0.0
        %352 = vmatprep.subr.mxu0 0.0
        %353 = vmatpush1.msra.mxu0 0.0
        %354 = vmatprep.subr.mxu0 0.0
        %355 = vmatpush1.msra.mxu0 0.0
        %356 = vmatprep.subr.mxu0 0.0
        %357 = vmatpush1.msra.mxu0 0.0
        %358 = vmatprep.subr.mxu0 0.0
        %359 = vmatpush1.msra.mxu0 %v326
        %360 = vmatprep.subr.mxu0 0.0
        %361 = vmatpush2.msra.mxu0 0.0
        %362 = vmatprep.subr.mxu0 0.0
        %363 = vmatpush2.msra.mxu0 0.0
        %364 = vmatprep.subr.mxu0 0.0
        %365 = vmatpush2.msra.mxu0 0.0
        %366 = vmatprep.subr.mxu0 0.0
        %367 = vmatpush2.msra.mxu0 0.0
        %368 = vmatprep.subr.mxu0 0.0
        %369 = vmatpush2.msra.mxu0 0.0
        %370 = vmatprep.subr.mxu0 0.0
        %371 = vmatpush2.msra.mxu0 0.0
        %372 = vmatprep.subr.mxu0 0.0
        %373 = vmatpush2.msra.mxu0 0.0
        %374 = vmatprep.subr.mxu0 0.0
        %375 = vmatpush2.msra.mxu0 0.0
        %376 = vmatprep.subr.mxu0 0.0
        %377 = vmatpush2.msra.mxu0 0.0
        %378 = vmatprep.subr.mxu0 0.0
        %379 = vmatpush2.msra.mxu0 0.0
        %380 = vmatprep.subr.mxu0 0.0
        %381 = vmatpush2.msra.mxu0 0.0
        %382 = vmatprep.subr.mxu0 0.0
        %383 = vmatpush2.msra.mxu0 0.0
        %384 = vmatprep.subr.mxu0 0.0
        %385 = vmatpush2.msra.mxu0 0.0
        %386 = vmatprep.subr.mxu0 0.0
        %387 = vmatpush2.msra.mxu0 0.0
        %388 = vmatprep.subr.mxu0 0.0
        %389 = vmatpush2.msra.mxu0 0.0
        %390 = vmatprep.subr.mxu0 0.0
        %391 = vmatpush2.msra.mxu0 0.0
        %392 = vmatprep.mubr.f32.mxu0 0.0
        %393 = vmatmul.mubr.f32.gmra.mxu0 %v319
        %v394 = vpop.f32.mrf.mxu0
        %v395 = vadd.f32 0.0, %v394
        %v396 = vpop.f32.mrf.mxu0
        %397 = vmatprep.mubr.f32.mxu0 0.0
        %398 = vmatmul.mubr.f32.gmra.mxu0 %v322
        %v399 = vpop.f32.mrf.mxu0
        %v400 = vadd.f32 0.0, %v399
        %v401 = vpop.f32.mrf.mxu0
        %402 = vdwg.mxu0
        %v403 = vadd.f32 %v305, %v317
        %v404 = vadd.f32 %v308, %v317
        %v405 = vmul.f32 %v395, 2.0
        %v406 = vmul.f32 %v400, 2.0
        %v407 = vsub.f32 %v403, %v405
        %v408 = vsub.f32 %v404, %v406
        %v409 = vmax.f32 %v407, 0.0
        %v410 = vmax.f32 %v408, 0.0
        %412 = vset.pattern.permute.xlu0 0
        %413 = vperm.xlu0 %412, %v297
        %v414 = vpop.permute.xlu0 %413
        %417 = vset.pattern.permute.xlu0 0
        %418 = vperm.xlu0 %417, %v298
        %v419 = vpop.permute.xlu0 %418
        %v422 = vlaneseq
        %v423 = vshrl.u32 %v422, 7
        %v424 = vsub.s32 0, %v423
        %v425 = vrot.slane %v299, %v424
        %v427 = vmul.f32 %v414, %v425
        %v428 = vmul.f32 %v419, %v425
        %v429 = vadd.f32 %v409, 1e-06
        %v430 = vadd.f32 %v410, 1e-06
        %v431 = vrsqrt.pop %v429
        %v432 = vmul.f32 %v429, %v431
        %vm433 = vcmp.eq.f32.partialorder %v429, inf
        %v434 = vsel %vm433, %v429, %v432
        %vm435 = vcmp.eq.f32.partialorder %v429, 0.0
        %v436 = vand.u32 %v429, 2147483648
        %v437 = vsel %vm435, %v436, %v434
        %v438 = vrsqrt.pop %v430
        %v439 = vmul.f32 %v430, %v438
        %vm440 = vcmp.eq.f32.partialorder %v430, inf
        %v441 = vsel %vm440, %v430, %v439
        %vm442 = vcmp.eq.f32.partialorder %v430, 0.0
        %v443 = vand.u32 %v430, 2147483648
        %v444 = vsel %vm442, %v443, %v441
        %v445 = vmul.f32 %v427, %v437
        %v446 = vmul.f32 %v428, %v444
        %vm447 = vcmask 130048
        %v448 = vsel %vm447, %v445, -inf
        %449 = vmax.xlane.f32.xlu0 %v448
        %v450 = vpop.xlane.xlu0 %449
        %v451 = vsel %vm447, %v446, -inf
        %452 = vmax.xlane.f32.xlu0 %v451
        %v453 = vpop.xlane.xlu0 %452
        %v454 = vsub.f32 1.0, %v427
        %v455 = vsub.f32 1.0, %v428
        %v456 = vmul.f32 %v454, %v450
        %v457 = vmul.f32 %v455, %v453
        %v458 = vadd.f32 %v445, %v456
        %v459 = vadd.f32 %v446, %v457
        %460 = vst.msk [vmem:[%s265] sm:$0xff] %vm447, %v458
        %461 = vst.msk [vmem:[%s265 + $0x8] sm:$0xff] %vm447, %v459
        %s462 = sand.u32 %s148, 1
        %s463 = scalar_lea.sflag [#allocation3], %s462
        %s464 = sand.u32 %s148, 1
        %s465 = smul.addr %s464, 16
        %s466 = scalar_lea.vmem [#allocation2], %s465
        // Predicated region
        $region37: #{tpu_custom_call.1} parent=35 // pred_check
          %p467 = pneg %p158
        $region38: #{tpu_custom_call.1} parent=35 // pred_check_branch
          %469 = sbr.rel (%p467) target = $region40
        $region39: #{tpu_custom_call.1} parent=35 // pred_region
          %s470 = smul.u32 2, %s23
          %s472 = ssub.s32 256, 256
          %473 = vsyncadd %s463, %s472
          %s474 = smul.addr %s22, 2
          %s475 = sadd.s32 %s470, %s474
          %s476 = smul.addr %s475, 128
          %s477 = scalar_lea.hbm %s4, %s476
          %s478 = sshll.u32 %s466, 4
          %s479 = int_to_ptr.vmem [resolvable:$true] %s478
          %484 = dma.vmem_to_hbm [thread:$0]  %s479, 256, %s477, %s463, 128, 128, 8
        $region40: #{tpu_custom_call.1} parent=35 // pred_fallthru
          _
      $region36: #{tpu_custom_call.1} parent=5 // pred_fallthru
        _
      %p485 = scmp.le.s32.totalorder 2, %s13
      // Predicated region
      $region41: #{tpu_custom_call.1} parent=5 // pred_check
        %p486 = pneg %p485
      $region42: #{tpu_custom_call.1} parent=5 // pred_check_branch
        %488 = sbr.rel (%p486) target = $region44
      $region43: #{tpu_custom_call.1} parent=5 // pred_region
        %s489 = ssub.s32 %s13, 2
        // Predicated region
        $region45: #{tpu_custom_call.1} parent=43 // pred_check
          %p490 = pneg %p164
        $region46: #{tpu_custom_call.1} parent=43 // pred_check_branch
          %492 = sbr.rel (%p490) target = $region48
        $region47: #{tpu_custom_call.1} parent=43 // pred_region
          %s493 = sand.u32 %s149, 1
          %s494 = scalar_lea.sflag [#allocation3], %s493
          %s495 = sand.u32 %s149, 1
          %s496 = smul.addr %s495, 16
          %s497 = scalar_lea.vmem [#allocation2], %s496
          %498 = dma.done %s494, 256
        $region48: #{tpu_custom_call.1} parent=43 // pred_fallthru
          _
      $region44: #{tpu_custom_call.1} parent=5 // pred_fallthru
        _
    $region6: #{tpu_custom_call.1} parent=1 // loop_footer
      %s17 = sadd.s32 1, %s13
    $region7: #{tpu_custom_call.1} parent=1 // loop_footer_branch
      %12 = sbr.rel target = $region3
    $region8: #{tpu_custom_call.1} parent=1 // loop_exit
      _
    %499 = vsyncpa [#allocation3], 1
    %s500 = scalar_lea.sflag [#allocation3], 1
    %501 = vsyncpa %s500, 1

</llo_original>
